<compile_context>
chip_gen: v7x
topology: tpu7x:2x2x1
jax: 0.10.0
libtpu: 0.0.40
codegen_flags: <defaults>
</compile_context>

<pallas_src>
import math

import jax
import jax.numpy as jnp
from jax.experimental import pallas as pl
from jax.experimental.pallas import tpu as pltpu

EPS = 1e-5


# --------------------------------------------------------------------------
# Kernel
# --------------------------------------------------------------------------
def _make_kernel(x_resident: bool, tk: int):
    """Builds the fused kernel. `x_resident` selects whether x arrives as one
    full-width resident block (sliced in-kernel) or as streamed (N, TK) blocks."""
    lane_hint = max(1, math.gcd(tk, 128))

    def kernel(x_ref, w1_ref, g1_ref, b1_ref,
               w2_ref, g2_ref, b2_ref,
               w34_ref, b34_ref,
               o_ref, acc_ref):
        k = pl.program_id(0)

        @pl.when(k == 0)
        def _init():
            acc_ref[...] = jnp.zeros_like(acc_ref)

        # ---- streamed partial matmul for linear1 (bf16 operands, f32 accum) ----
        if x_resident:
            start = pl.multiple_of(k * tk, lane_hint)
            x_blk = x_ref[:, pl.ds(start, tk)]
        else:
            x_blk = x_ref[...]
        acc_ref[...] += jnp.dot(x_blk, w1_ref[...],
                                preferred_element_type=jnp.float32)

        @pl.when(k == pl.num_programs(0) - 1)
        def _epilogue():
            h = acc_ref[...]

            # ---- bn1 (batch stats, biased var) as fused FMA + relu1 ----
            mean = jnp.mean(h, axis=0, keepdims=True)
            var = jnp.mean((h - mean) ** 2, axis=0, keepdims=True)
            scale = g1_ref[...] * jax.lax.rsqrt(var + EPS)
            h = jnp.maximum(h * scale + (b1_ref[...] - mean * scale), 0.0)

            # ---- linear2 (no bias); bf16 operands, f32 accumulation ----
            h = jnp.dot(h.astype(jnp.bfloat16), w2_ref[...],
                        preferred_element_type=jnp.float32)

            # ---- bn2 fused FMA + relu2 ----
            mean = jnp.mean(h, axis=0, keepdims=True)
            var = jnp.mean((h - mean) ** 2, axis=0, keepdims=True)
            scale = g2_ref[...] * jax.lax.rsqrt(var + EPS)
            h = jnp.maximum(h * scale + (b2_ref[...] - mean * scale), 0.0)

            # ---- folded linear3 . linear4 (bf16 weights, lane-padded output) ----
            o_ref[...] = (jnp.dot(h.astype(jnp.bfloat16), w34_ref[...],
                                  preferred_element_type=jnp.float32)
                          + b34_ref[...]).astype(o_ref.dtype)

    return kernel


# --------------------------------------------------------------------------
# One-time parameter preparation (hoisted out of the per-call path)
# --------------------------------------------------------------------------
def _vmem_capacity_bytes():
    try:
        return int(pltpu.get_tpu_info().vmem_capacity_bytes)
    except Exception:
        return 64 << 20  # conservative (v7x per-TensorCore VMEM)


def _pick_tk(in_dim, d1, per_buf_bytes):
    """Largest K-tile that (a) keeps the bf16 w1 block under per_buf_bytes and
    (b) divides in_dim exactly (no K padding) with lane/sublane-friendly size."""
    max_tk = max(128, per_buf_bytes // (d1 * 2))
    for m in (256, 128):
        hi = min(in_dim, max_tk)
        cands = [t for t in range(m, hi + 1, m) if in_dim % t == 0]
        if cands:
            return max(cands), in_dim            # exact divisor -> no padding
    if in_dim <= max_tk:
        return in_dim, in_dim                    # single full-width step
    tk = max(256, (max_tk // 256) * 256)         # fallback: pad K
    return tk, pl.cdiv(in_dim, tk) * tk


def prepare_params(params, *, tk=None, vmem_capacity=None):
    """One-time (per model init) weight prep: bf16 casts, linear3.linear4 fold,
    lane/K padding, tile-size selection.  The per-call wrapper only casts x."""
    in_dim, d1 = params["w1"].shape
    d2 = params["w2"].shape[1]
    n_classes = params["w4"].shape[1]
    hi = jax.lax.Precision.HIGHEST

    if vmem_capacity is None:
        vmem_capacity = _vmem_capacity_bytes()
    # Bigger w1 tiles on 128 MiB VMEM parts (v5e/v6e), smaller on 64 MiB (v7x).
    per_buf = (14 << 20) if vmem_capacity >= (100 << 20) else (8 << 20)

    if tk is None:
        tk, k_pad = _pick_tk(in_dim, d1, per_buf)
    else:
        k_pad = in_dim if in_dim % tk == 0 else pl.cdiv(in_dim, tk) * tk

    # w1: pre-cast to bf16 (and pre-pad only if TK does not divide in_dim).
    w1_bf = params["w1"].astype(jnp.bfloat16)
    if k_pad != in_dim:
        w1_bf = jnp.pad(w1_bf, ((0, k_pad - in_dim), (0, 0)))

    # Fold linear3 . linear4 (exact algebra; no nonlinearity between them).
    w34 = jnp.dot(params["w3"], params["w4"], precision=hi)
    b34 = jnp.dot(params["b3"], params["w4"], precision=hi) + params["b4"]
    n_pad = pl.cdiv(max(n_classes, 128), 128) * 128
    w34 = jnp.pad(w34, ((0, 0), (0, n_pad - n_classes))).astype(jnp.bfloat16)
    b34 = jnp.pad(b34, ((0, 0), (0, n_pad - n_classes))).astype(jnp.float32)

    return {
        "tk": int(tk), "k_pad": int(k_pad), "in_dim": int(in_dim),
        "d1": int(d1), "d2": int(d2),
        "n_classes": int(n_classes), "n_pad": int(n_pad),
        "vmem_capacity": int(vmem_capacity),
        "w1": w1_bf,
        "w2": params["w2"].astype(jnp.bfloat16),
        "g1": params["g1"].astype(jnp.float32),
        "b1": params["b1"].astype(jnp.float32),
        "g2": params["g2"].astype(jnp.float32),
        "b2": params["b2"].astype(jnp.float32),
        "w34": w34, "b34": b34,
    }


def _vmem_limit_bytes(n, tk, k_pad, d1, d2, n_pad, x_resident, vmem_capacity):
    """Derive the VMEM scoped limit from the actual buffer plan (per review)."""
    bf16, f32 = 2, 4
    w1_stream = 2 * tk * d1 * bf16                                 # double-buffered w1 tiles
    x_bytes = (2 * n * k_pad * bf16) if x_resident else (2 * n * tk * bf16)
    resident = 2 * (d1 * d2 * bf16 + d2 * n_pad * bf16
                    + (2 * d1 + 2 * d2 + n_pad) * f32)             # default double-buffered
    acc = n * d1 * f32
    out = 2 * n * n_pad * f32
    total = w1_stream + x_bytes + resident + acc + out + (4 << 20)  # headroom / compiler scratch
    cap = int(vmem_capacity * 0.85)
    return int(min(max(total, 16 << 20), cap))


# --------------------------------------------------------------------------
# Per-call wrapper
# --------------------------------------------------------------------------
def rot_pred_head(x, pp):
    """x: (N, in_dim) float32.  pp: output of prepare_params (pre-cast weights)."""
    assert x.ndim == 2 and x.shape[1] == pp["in_dim"]
    n = x.shape[0]
    tk, k_pad = pp["tk"], pp["k_pad"]
    d1, d2, n_pad = pp["d1"], pp["d2"], pp["n_pad"]

    # Only the activation is touched per call (tiny compared to the w1 stream).
    x_bf = x.astype(jnp.bfloat16)
    if k_pad != pp["in_dim"]:
        x_bf = jnp.pad(x_bf, ((0, 0), (0, k_pad - pp["in_dim"])))

    # Keep x fully resident in VMEM (sliced in-kernel) when it is small; this
    # removes per-step small strided x DMAs and dedicates DMA to the w1 stream.
    x_resident = (n * k_pad * 2) <= (8 << 20)

    grid = (k_pad // tk,)
    if x_resident:
        x_spec = pl.BlockSpec((n, k_pad), lambda k: (0, 0))
    else:
        x_spec = pl.BlockSpec((n, tk), lambda k: (0, k))

    flops = 2 * n * (k_pad * d1 + d1 * d2 + d2 * n_pad)
    bytes_accessed = (n * k_pad * 2 + k_pad * d1 * 2
                      + d1 * d2 * 2 + d2 * n_pad * 2
                      + (2 * d1 + 2 * d2 + n_pad) * 4
                      + n * n_pad * 4)

    out_padded = pl.pallas_call(
        _make_kernel(x_resident, tk),
        out_shape=jax.ShapeDtypeStruct((n, n_pad), jnp.float32),
        grid_spec=pltpu.PrefetchScalarGridSpec(
            num_scalar_prefetch=0,
            grid=grid,
            in_specs=[
                x_spec,                                        # x  (bf16)
                pl.BlockSpec((tk, d1), lambda k: (k, 0)),      # w1 (streamed, bf16)
                pl.BlockSpec((1, d1), lambda k: (0, 0)),       # bn1 gamma
                pl.BlockSpec((1, d1), lambda k: (0, 0)),       # bn1 beta
                pl.BlockSpec((d1, d2), lambda k: (0, 0)),      # w2 (bf16)
                pl.BlockSpec((1, d2), lambda k: (0, 0)),       # bn2 gamma
                pl.BlockSpec((1, d2), lambda k: (0, 0)),       # bn2 beta
                pl.BlockSpec((d2, n_pad), lambda k: (0, 0)),   # folded w3@w4 (bf16, padded)
                pl.BlockSpec((1, n_pad), lambda k: (0, 0)),    # folded bias (padded)
            ],
            out_specs=pl.BlockSpec((n, n_pad), lambda k: (0, 0)),
            scratch_shapes=[pltpu.VMEM((n, d1), jnp.float32)],  # linear1 accumulator
        ),
        compiler_params=pltpu.CompilerParams(
            dimension_semantics=("arbitrary",),
            vmem_limit_bytes=_vmem_limit_bytes(
                n, tk, k_pad, d1, d2, n_pad, x_resident, pp["vmem_capacity"]),
        ),
        cost_estimate=pl.CostEstimate(
            flops=flops, transcendentals=0, bytes_accessed=bytes_accessed),
    )(x_bf, pp["w1"], pp["g1"], pp["b1"],
      pp["w2"], pp["g2"], pp["b2"], pp["w34"], pp["b34"])

    return out_padded[:, :pp["n_classes"]]


# --------------------------------------------------------------------------
# References
# --------------------------------------------------------------------------
def reference_dtype_matched(x, p):
    """Plain-JAX mirror of the kernel's math (bf16 MXU operands, f32
    accumulation & BN stats, folded linear3.linear4): tight-tolerance check."""
    hi = jax.lax.Precision.HIGHEST
    h = jnp.dot(x.astype(jnp.bfloat16), p["w1"].astype(jnp.bfloat16),
                preferred_element_type=jnp.float32)
    m = h.mean(0, keepdims=True)
    v = ((h - m) ** 2).mean(0, keepdims=True)
    h = jnp.maximum((h - m) * jax.lax.rsqrt(v + EPS) * p["g1"] + p["b1"], 0.0)

    h = jnp.dot(h.astype(jnp.bfloat16), p["w2"].astype(jnp.bfloat16),
                preferred_element_type=jnp.float32)
    m = h.mean(0, keepdims=True)
    v = ((h - m) ** 2).mean(0, keepdims=True)
    h = jnp.maximum((h - m) * jax.lax.rsqrt(v + EPS) * p["g2"] + p["b2"], 0.0)

    w34 = jnp.dot(p["w3"], p["w4"], precision=hi).astype(jnp.bfloat16)
    b34 = jnp.dot(p["b3"], p["w4"], precision=hi) + p["b4"]
    return jnp.dot(h.astype(jnp.bfloat16), w34,
                   preferred_element_type=jnp.float32) + b34


def reference_f32(x, p):
    """Module-order, full-f32, unfused reference (semantic sanity check)."""
    hi = jax.lax.Precision.HIGHEST
    h = jnp.dot(x, p["w1"], precision=hi)
    m = h.mean(0, keepdims=True)
    v = ((h - m) ** 2).mean(0, keepdims=True)
    h = jnp.maximum((h - m) * jax.lax.rsqrt(v + EPS) * p["g1"] + p["b1"], 0.0)

    h = jnp.dot(h, p["w2"], precision=hi)
    m = h.mean(0, keepdims=True)
    v = ((h - m) ** 2).mean(0, keepdims=True)
    h = jnp.maximum((h - m) * jax.lax.rsqrt(v + EPS) * p["g2"] + p["b2"], 0.0)

    h = jnp.dot(h, p["w3"], precision=hi) + p["b3"]
    return jnp.dot(h, p["w4"], precision=hi) + p["b4"]


def make_params(key, in_dim, d1, d2, out_dim, n_classes):
    ks = jax.random.split(key, 8)
    scale = 0.02
    return {
        # Linear weights stored transposed: (in_features, out_features)
        "w1": scale * jax.random.normal(ks[0], (in_dim, d1), jnp.float32),
        "g1": 1.0 + 0.1 * jax.random.normal(ks[1], (1, d1), jnp.float32),
        "b1": 0.1 * jax.random.normal(ks[2], (1, d1), jnp.float32),
        "w2": scale * jax.random.normal(ks[3], (d1, d2), jnp.float32),
        "g2": 1.0 + 0.1 * jax.random.normal(ks[4], (1, d2), jnp.float32),
        "b2": 0.1 * jax.random.normal(ks[5], (1, d2), jnp.float32),
        "w3": scale * jax.random.normal(ks[6], (d2, out_dim), jnp.float32),
        "b3": jnp.zeros((1, out_dim), jnp.float32) + 0.01,
        "w4": scale * jax.random.normal(ks[7], (out_dim, n_classes), jnp.float32),
        "b4": jnp.zeros((1, n_classes), jnp.float32) + 0.02,
    }


if __name__ == "__main__":
    # Small shapes consistent with the module (50176, 1024, 512, 512, 4 scaled down).
    N, IN_DIM, D1, D2, OUT_DIM, CLASSES = 16, 1024, 256, 128, 128, 4

    key = jax.random.PRNGKey(0)
    kx, kp = jax.random.split(key)
    x = jax.random.normal(kx, (N, IN_DIM), jnp.float32)
    params = make_params(kp, IN_DIM, D1, D2, OUT_DIM, CLASSES)

    # One-time weight prep (bf16 cast / fold / pad happens here, not per call).
    # tk=256 -> 4-step K pipeline, exercising the streamed/accumulated path.
    prepped = prepare_params(params, tk=256)

    out = rot_pred_head(x, prepped)
    jax.block_until_ready(out)
    assert out.shape == (N, CLASSES)

    ref_m = reference_dtype_matched(x, params)
    assert jnp.allclose(out, ref_m, atol=5e-4, rtol=5e-3), (
        f"mismatch vs dtype-matched reference: "
        f"max abs err {jnp.max(jnp.abs(out - ref_m))}")

    ref_f = reference_f32(x, params)
    assert jnp.allclose(out, ref_f, atol=2e-2, rtol=2e-2), (
        f"mismatch vs f32 reference: max abs err {jnp.max(jnp.abs(out - ref_f))}")

    print("KERNEL_OK")
</pallas_src>

<mosaic_0001>
module attributes {stable_mosaic.version = 11 : i64} {
  func.func @kernel(%arg0: i32, %arg1: memref<16x1024xbf16, #tpu.memory_space<vmem>>, %arg2: memref<256x256xbf16, #tpu.memory_space<vmem>>, %arg3: memref<1x256xf32, #tpu.memory_space<vmem>>, %arg4: memref<1x256xf32, #tpu.memory_space<vmem>>, %arg5: memref<256x128xbf16, #tpu.memory_space<vmem>>, %arg6: memref<1x128xf32, #tpu.memory_space<vmem>>, %arg7: memref<1x128xf32, #tpu.memory_space<vmem>>, %arg8: memref<128x128xbf16, #tpu.memory_space<vmem>>, %arg9: memref<1x128xf32, #tpu.memory_space<vmem>>, %arg10: memref<16x128xf32, #tpu.memory_space<vmem>>, %arg11: memref<16x256xf32, #tpu.memory_space<vmem>>) attributes {dimension_semantics = [#tpu.dimension_semantics<arbitrary>], iteration_bounds = array<i64: 4>, scalar_prefetch = 0 : i64, scratch_operands = 1 : i64, tpu.core_type = #tpu.core_type<tc>, window_params = [{pipeline_mode = #tpu.pipeline_mode<synchronous>, transform_indices = @transform_0, window_bounds = array<i64: 16, 1024>}, {transform_indices = @transform_1, window_bounds = array<i64: 256, 256>}, {pipeline_mode = #tpu.pipeline_mode<synchronous>, transform_indices = @transform_2, window_bounds = array<i64: 1, 256>}, {pipeline_mode = #tpu.pipeline_mode<synchronous>, transform_indices = @transform_3, window_bounds = array<i64: 1, 256>}, {pipeline_mode = #tpu.pipeline_mode<synchronous>, transform_indices = @transform_4, window_bounds = array<i64: 256, 128>}, {pipeline_mode = #tpu.pipeline_mode<synchronous>, transform_indices = @transform_5, window_bounds = array<i64: 1, 128>}, {pipeline_mode = #tpu.pipeline_mode<synchronous>, transform_indices = @transform_6, window_bounds = array<i64: 1, 128>}, {pipeline_mode = #tpu.pipeline_mode<synchronous>, transform_indices = @transform_7, window_bounds = array<i64: 128, 128>}, {pipeline_mode = #tpu.pipeline_mode<synchronous>, transform_indices = @transform_8, window_bounds = array<i64: 1, 128>}, {pipeline_mode = #tpu.pipeline_mode<synchronous>, transform_indices = @transform_9, window_bounds = array<i64: 16, 128>}]} {
    %c0_i32 = arith.constant 0 : i32
    %0 = arith.cmpi eq, %arg0, %c0_i32 : i32
    %1 = arith.extui %0 : i1 to i32
    %c0_i32_0 = arith.constant 0 : i32
    %2 = arith.cmpi ne, %1, %c0_i32_0 : i32
    scf.if %2 {
      %cst_8 = arith.constant 0.000000e+00 : f32
      %15 = vector.broadcast %cst_8 : f32 to vector<16x256xf32>
      %c0_9 = arith.constant 0 : index
      %c0_10 = arith.constant 0 : index
      %16 = vector.load %arg11[%c0_9, %c0_10] : memref<16x256xf32, #tpu.memory_space<vmem>>, vector<16x256xf32>
      tpu.vector_store %arg11[%c0_9, %c0_10], %15 {strides = array<i32>} : memref<16x256xf32, #tpu.memory_space<vmem>>, vector<16x256xf32>,
    } else {
    }
    %c256_i32 = arith.constant 256 : i32
    %3 = arith.muli %arg0, %c256_i32 : i32
    %4 = tpu.assume_multiple %3, 128 : i32
    %c0 = arith.constant 0 : index
    %5 = arith.index_cast %4 : i32 to index
    %6 = vector.load %arg1[%c0, %5] : memref<16x1024xbf16, #tpu.memory_space<vmem>>, vector<16x256xbf16>
    %c0_1 = arith.constant 0 : index
    %c0_2 = arith.constant 0 : index
    %7 = vector.load %arg11[%c0_1, %c0_2] : memref<16x256xf32, #tpu.memory_space<vmem>>, vector<16x256xf32>
    %c0_3 = arith.constant 0 : index
    %c0_4 = arith.constant 0 : index
    %8 = vector.load %arg2[%c0_3, %c0_4] : memref<256x256xbf16, #tpu.memory_space<vmem>>, vector<256x256xbf16>
    %cst = arith.constant dense<0.000000e+00> : vector<16x256xf32>
    %9 = tpu.matmul %6, %8, %cst {dimension_numbers = #tpu.dot_dimension_numbers<[1], [0], [0], [1], [0, 0, 1, 1], [], []>} : vector<16x256xbf16>, vector<256x256xbf16>, vector<16x256xf32> -> vector<16x256xf32>
    %10 = arith.addf %7, %9 : vector<16x256xf32>
    %c0_5 = arith.constant 0 : index
    %c0_6 = arith.constant 0 : index
    %11 = vector.load %arg11[%c0_5, %c0_6] : memref<16x256xf32, #tpu.memory_space<vmem>>, vector<16x256xf32>
    tpu.vector_store %arg11[%c0_5, %c0_6], %10 {strides = array<i32>} : memref<16x256xf32, #tpu.memory_space<vmem>>, vector<16x256xf32>,
    %c3_i32 = arith.constant 3 : i32
    %12 = arith.cmpi eq, %arg0, %c3_i32 : i32
    %13 = arith.extui %12 : i1 to i32
    %c0_i32_7 = arith.constant 0 : i32
    %14 = arith.cmpi ne, %13, %c0_i32_7 : i32
    scf.if %14 {
      %c0_8 = arith.constant 0 : index
      %c0_9 = arith.constant 0 : index
      %15 = vector.load %arg11[%c0_8, %c0_9] : memref<16x256xf32, #tpu.memory_space<vmem>>, vector<16x256xf32>
      %cst_10 = arith.constant dense<0.000000e+00> : vector<256xf32>
      %16 = vector.multi_reduction <add>, %15, %cst_10 [0] : vector<16x256xf32> to vector<256xf32>
      %17 = vector.shape_cast %16 : vector<256xf32> to vector<1x256xf32>
      %cst_11 = arith.constant 1.600000e+01 : f32
      %18 = vector.broadcast %cst_11 : f32 to vector<1x256xf32>
      %19 = arith.divf %17, %18 : vector<1x256xf32>
      %20 = vector.broadcast %19 : vector<1x256xf32> to vector<16x256xf32>
      %21 = arith.subf %15, %20 : vector<16x256xf32>
      %22 = arith.mulf %21, %21 : vector<16x256xf32>
      %cst_12 = arith.constant dense<0.000000e+00> : vector<256xf32>
      %23 = vector.multi_reduction <add>, %22, %cst_12 [0] : vector<16x256xf32> to vector<256xf32>
      %24 = vector.shape_cast %23 : vector<256xf32> to vector<1x256xf32>
      %cst_13 = arith.constant 1.600000e+01 : f32
      %25 = vector.broadcast %cst_13 : f32 to vector<1x256xf32>
      %26 = arith.divf %24, %25 : vector<1x256xf32>
      %c0_14 = arith.constant 0 : index
      %c0_15 = arith.constant 0 : index
      %27 = vector.load %arg3[%c0_14, %c0_15] : memref<1x256xf32, #tpu.memory_space<vmem>>, vector<1x256xf32>
      %cst_16 = arith.constant 9.99999974E-6 : f32
      %28 = vector.broadcast %cst_16 : f32 to vector<1x256xf32>
      %29 = arith.addf %26, %28 : vector<1x256xf32>
      %30 = math.rsqrt %29 : vector<1x256xf32>
      %31 = arith.mulf %27, %30 : vector<1x256xf32>
      %32 = vector.broadcast %31 : vector<1x256xf32> to vector<16x256xf32>
      %33 = arith.mulf %15, %32 : vector<16x256xf32>
      %c0_17 = arith.constant 0 : index
      %c0_18 = arith.constant 0 : index
      %34 = vector.load %arg4[%c0_17, %c0_18] : memref<1x256xf32, #tpu.memory_space<vmem>>, vector<1x256xf32>
      %35 = arith.mulf %19, %31 : vector<1x256xf32>
      %36 = arith.subf %34, %35 : vector<1x256xf32>
      %37 = vector.broadcast %36 : vector<1x256xf32> to vector<16x256xf32>
      %38 = arith.addf %33, %37 : vector<16x256xf32>
      %cst_19 = arith.constant 0.000000e+00 : f32
      %39 = vector.broadcast %cst_19 : f32 to vector<16x256xf32>
      %40 = arith.maximumf %38, %39 : vector<16x256xf32>
      %41 = arith.truncf %40 : vector<16x256xf32> to vector<16x256xbf16>
      %c0_20 = arith.constant 0 : index
      %c0_21 = arith.constant 0 : index
      %42 = vector.load %arg5[%c0_20, %c0_21] : memref<256x128xbf16, #tpu.memory_space<vmem>>, vector<256x128xbf16>
      %cst_22 = arith.constant dense<0.000000e+00> : vector<16x128xf32>
      %43 = tpu.matmul %41, %42, %cst_22 {dimension_numbers = #tpu.dot_dimension_numbers<[1], [0], [0], [1], [0, 0, 1, 1], [], []>} : vector<16x256xbf16>, vector<256x128xbf16>, vector<16x128xf32> -> vector<16x128xf32>
      %cst_23 = arith.constant dense<0.000000e+00> : vector<128xf32>
      %44 = vector.multi_reduction <add>, %43, %cst_23 [0] : vector<16x128xf32> to vector<128xf32>
      %45 = vector.shape_cast %44 : vector<128xf32> to vector<1x128xf32>
      %cst_24 = arith.constant 1.600000e+01 : f32
      %46 = vector.broadcast %cst_24 : f32 to vector<1x128xf32>
      %47 = arith.divf %45, %46 : vector<1x128xf32>
      %48 = vector.broadcast %47 : vector<1x128xf32> to vector<16x128xf32>
      %49 = arith.subf %43, %48 : vector<16x128xf32>
      %50 = arith.mulf %49, %49 : vector<16x128xf32>
      %cst_25 = arith.constant dense<0.000000e+00> : vector<128xf32>
      %51 = vector.multi_reduction <add>, %50, %cst_25 [0] : vector<16x128xf32> to vector<128xf32>
      %52 = vector.shape_cast %51 : vector<128xf32> to vector<1x128xf32>
      %cst_26 = arith.constant 1.600000e+01 : f32
      %53 = vector.broadcast %cst_26 : f32 to vector<1x128xf32>
      %54 = arith.divf %52, %53 : vector<1x128xf32>
      %c0_27 = arith.constant 0 : index
      %c0_28 = arith.constant 0 : index
      %55 = vector.load %arg6[%c0_27, %c0_28] : memref<1x128xf32, #tpu.memory_space<vmem>>, vector<1x128xf32>
      %cst_29 = arith.constant 9.99999974E-6 : f32
      %56 = vector.broadcast %cst_29 : f32 to vector<1x128xf32>
      %57 = arith.addf %54, %56 : vector<1x128xf32>
      %58 = math.rsqrt %57 : vector<1x128xf32>
      %59 = arith.mulf %55, %58 : vector<1x128xf32>
      %60 = vector.broadcast %59 : vector<1x128xf32> to vector<16x128xf32>
      %61 = arith.mulf %43, %60 : vector<16x128xf32>
      %c0_30 = arith.constant 0 : index
      %c0_31 = arith.constant 0 : index
      %62 = vector.load %arg7[%c0_30, %c0_31] : memref<1x128xf32, #tpu.memory_space<vmem>>, vector<1x128xf32>
      %63 = arith.mulf %47, %59 : vector<1x128xf32>
      %64 = arith.subf %62, %63 : vector<1x128xf32>
      %65 = vector.broadcast %64 : vector<1x128xf32> to vector<16x128xf32>
      %66 = arith.addf %61, %65 : vector<16x128xf32>
      %cst_32 = arith.constant 0.000000e+00 : f32
      %67 = vector.broadcast %cst_32 : f32 to vector<16x128xf32>
      %68 = arith.maximumf %66, %67 : vector<16x128xf32>
      %69 = arith.truncf %68 : vector<16x128xf32> to vector<16x128xbf16>
      %c0_33 = arith.constant 0 : index
      %c0_34 = arith.constant 0 : index
      %70 = vector.load %arg8[%c0_33, %c0_34] : memref<128x128xbf16, #tpu.memory_space<vmem>>, vector<128x128xbf16>
      %cst_35 = arith.constant dense<0.000000e+00> : vector<16x128xf32>
      %71 = tpu.matmul %69, %70, %cst_35 {dimension_numbers = #tpu.dot_dimension_numbers<[1], [0], [0], [1], [0, 0, 1, 1], [], []>} : vector<16x128xbf16>, vector<128x128xbf16>, vector<16x128xf32> -> vector<16x128xf32>
      %c0_36 = arith.constant 0 : index
      %c0_37 = arith.constant 0 : index
      %72 = vector.load %arg9[%c0_36, %c0_37] : memref<1x128xf32, #tpu.memory_space<vmem>>, vector<1x128xf32>
      %73 = vector.broadcast %72 : vector<1x128xf32> to vector<16x128xf32>
      %74 = arith.addf %71, %73 : vector<16x128xf32>
      %c0_38 = arith.constant 0 : index
      %c0_39 = arith.constant 0 : index
      %75 = vector.load %arg10[%c0_38, %c0_39] : memref<16x128xf32, #tpu.memory_space<vmem>>, vector<16x128xf32>
      tpu.vector_store %arg10[%c0_38, %c0_39], %74 {strides = array<i32>} : memref<16x128xf32, #tpu.memory_space<vmem>>, vector<16x128xf32>,
    } else {
    }
    return
  }
  func.func @transform_0(%arg0: i32) -> (i32, i32) {
    %c0_i32 = arith.constant 0 : i32
    %c0_i32_0 = arith.constant 0 : i32
    %c0_i32_1 = arith.constant 0 : i32
    return %c0_i32, %c0_i32_0 : i32, i32
  }
  func.func @transform_1(%arg0: i32) -> (i32, i32) {
    %c0_i32 = arith.constant 0 : i32
    %c0_i32_0 = arith.constant 0 : i32
    return %arg0, %c0_i32 : i32, i32
  }
  func.func @transform_2(%arg0: i32) -> (i32, i32) {
    %c0_i32 = arith.constant 0 : i32
    %c0_i32_0 = arith.constant 0 : i32
    %c0_i32_1 = arith.constant 0 : i32
    return %c0_i32, %c0_i32_0 : i32, i32
  }
  func.func @transform_3(%arg0: i32) -> (i32, i32) {
    %c0_i32 = arith.constant 0 : i32
    %c0_i32_0 = arith.constant 0 : i32
    %c0_i32_1 = arith.constant 0 : i32
    return %c0_i32, %c0_i32_0 : i32, i32
  }
  func.func @transform_4(%arg0: i32) -> (i32, i32) {
    %c0_i32 = arith.constant 0 : i32
    %c0_i32_0 = arith.constant 0 : i32
    %c0_i32_1 = arith.constant 0 : i32
    return %c0_i32, %c0_i32_0 : i32, i32
  }
  func.func @transform_5(%arg0: i32) -> (i32, i32) {
    %c0_i32 = arith.constant 0 : i32
    %c0_i32_0 = arith.constant 0 : i32
    %c0_i32_1 = arith.constant 0 : i32
    return %c0_i32, %c0_i32_0 : i32, i32
  }
  func.func @transform_6(%arg0: i32) -> (i32, i32) {
    %c0_i32 = arith.constant 0 : i32
    %c0_i32_0 = arith.constant 0 : i32
    %c0_i32_1 = arith.constant 0 : i32
    return %c0_i32, %c0_i32_0 : i32, i32
  }
  func.func @transform_7(%arg0: i32) -> (i32, i32) {
    %c0_i32 = arith.constant 0 : i32
    %c0_i32_0 = arith.constant 0 : i32
    %c0_i32_1 = arith.constant 0 : i32
    return %c0_i32, %c0_i32_0 : i32, i32
  }
  func.func @transform_8(%arg0: i32) -> (i32, i32) {
    %c0_i32 = arith.constant 0 : i32
    %c0_i32_0 = arith.constant 0 : i32
    %c0_i32_1 = arith.constant 0 : i32
    return %c0_i32, %c0_i32_0 : i32, i32
  }
  func.func @transform_9(%arg0: i32) -> (i32, i32) {
    %c0_i32 = arith.constant 0 : i32
    %c0_i32_0 = arith.constant 0 : i32
    %c0_i32_1 = arith.constant 0 : i32
    return %c0_i32, %c0_i32_0 : i32, i32
  }
}

</mosaic_0001>

<llo_original>
// kernel: tpu_custom_call.1
$region0: #{tpu_custom_call.1}
  #allocation0 [shape = 'u32[]', space=smem, size = 0x4, offset = 0x4, fixed_abs, tag = 'smem constant byte address 0x4 - core index']
  #allocation1 [shape = 'u32[144,128]{1,0:T(1,128)}', space=vmem, size = 0x12000, scoped, tag = 'internal scratch']
  #allocation2 [shape = 'f32[16,256]{1,0:T(8,128)}', space=vmem, size = 0x4000, scoped, tag = 'scratch operand']
  %s0 = inlined_call_operand.hbm [shape: bf16[16,1024], index: 0, kind: input, shape index: {}]
  %s1 = inlined_call_operand.hbm [shape: bf16[1024,256], index: 1, kind: input, shape index: {}]
  %s2 = inlined_call_operand.vmem [shape: f32[1,256], index: 2, kind: input, shape index: {}]
  %s3 = inlined_call_operand.vmem [shape: f32[1,256], index: 3, kind: input, shape index: {}]
  %s4 = inlined_call_operand.hbm [shape: bf16[256,128], index: 4, kind: input, shape index: {}]
  %s5 = inlined_call_operand.vmem [shape: f32[1,128], index: 5, kind: input, shape index: {}]
  %s6 = inlined_call_operand.vmem [shape: f32[1,128], index: 6, kind: input, shape index: {}]
  %s7 = inlined_call_operand.hbm [shape: bf16[128,128], index: 7, kind: input, shape index: {}]
  %s8 = inlined_call_operand.vmem [shape: f32[1,128], index: 8, kind: input, shape index: {}]
  %s9 = inlined_call_operand.hbm [shape: f32[16,128], index: 9, kind: output, shape index: {}]
  %s10 = sld [smem:[#allocation0]]
  $region93: #{tpu_custom_call.1} parent=0
    _
  %s12 = ssub.s32 1, %s10
  %s13 = scalar_select 0, %s12, %s10
  $region1: #{tpu_custom_call.1} parent=0
    #allocation3 [shape = 'u8[32768]{0}', space=vmem, size = 0x8000, scoped, tag = 'input window, operand 0, single buffered']
    #allocation4 [shape = 's32[2]{0}', space=sflag, size = 0x8, scoped, tag = 'scoped memory for tpu_custom_call.1']
    #allocation5 [shape = 's32[2]{0}', space=sflag, size = 0x8, scoped, tag = 'scoped memory for tpu_custom_call.1']
    #allocation6 [shape = 'u8[262144]{0}', space=vmem, size = 0x40000, scoped, tag = 'input window, operand 1']
    #allocation7 [shape = 's32[2]{0}', space=sflag, size = 0x8, scoped, tag = 'scoped memory for tpu_custom_call.1']
    #allocation8 [shape = 'u8[65536]{0}', space=vmem, size = 0x10000, scoped, tag = 'input window, operand 4, single buffered']
    #allocation9 [shape = 'u8[32768]{0}', space=vmem, size = 0x8000, scoped, tag = 'input window, operand 7, single buffered']
    #allocation10 [shape = 's32[1]{0}', space=sflag, size = 0x4, scoped, tag = 'scoped memory for tpu_custom_call.1']
    #allocation11 [shape = 'u8[8192]{0}', space=vmem, size = 0x2000, scoped, tag = 'output window, operand 0, single buffered']
    %14 = vsyncpa [#allocation4], 0
    %15 = vsyncpa [#allocation7], 0
    %s16 = scalar_lea.sflag [#allocation7], 1
    %17 = vsyncpa %s16, 0
    %18 = vsyncpa [#allocation10], 0
    %19 = vsyncpa [#allocation5], 0
    loop: start=0, step=1, limit=6
    $region2: #{tpu_custom_call.1} parent=1 // loop_pre_header
      _
    $region3: #{tpu_custom_call.1} parent=1 // loop_header
      %s21 = sphi 0, %s25
      %p22 = scmp.ge.s32.totalorder %s21, 6
      %s29 = sphi 0, %s29
      %s31 = sphi 0, %s29
      %s32 = sphi 0, %s31
      %s46 = sphi 0, %s32
      %s52 = sphi 0, %s54
      %s55 = sphi 0, %s52
      %s56 = sphi 0, %s55
      %s72 = sphi 0, %s56
      %s76 = sphi 0, %s76
      %s78 = sphi 0, %s76
      %s79 = sphi 0, %s78
      %s93 = sphi 0, %s79
      %s97 = sphi 0, %s97
      %s99 = sphi 0, %s97
      %s100 = sphi 0, %s99
      %s114 = sphi 0, %s100
      %s118 = sphi 0, %s118
      %s120 = sphi 0, %s118
      %s121 = sphi 0, %s120
      %s135 = sphi 0, %s121
      %s139 = sphi 0, %s139
      %s141 = sphi 0, %s139
      %s142 = sphi 0, %s141
      %s156 = sphi 0, %s142
      %s160 = sphi 0, %s160
      %s162 = sphi 0, %s160
      %s163 = sphi 0, %s162
      %s177 = sphi 0, %s163
      %s181 = sphi 0, %s181
      %s183 = sphi 0, %s181
      %s184 = sphi 0, %s183
      %s198 = sphi 0, %s184
      %s202 = sphi 0, %s202
      %s204 = sphi 0, %s202
      %s205 = sphi 0, %s204
      %s219 = sphi 0, %s205
      %s223 = sphi 0, %s223
      %s225 = sphi 0, %s223
      %s226 = sphi 0, %s225
      %s240 = sphi 0, %s226
    $region4: #{tpu_custom_call.1} parent=1 // loop_header_branch
      %24 = sbr.rel (%p22) target = $region8
    $region5: #{tpu_custom_call.1} parent=1 // loop_body
      %s26 = ssub.s32 %s21, 1
      %s27 = ssub.s32 %s21, 2
      %s28 = sadd.s32 %s21, 1
      %s30 = sadd.s32 %s29, 1
      %p33 = scmp.eq.s32.totalorder %s21, 3
      %p34 = scmp.ne.s32.totalorder %s29, %s31
      %p35 = scmp.eq.s32.totalorder %s21, 0
      %p36 = por %p34, %p35
      %p37 = scmp.ne.s32.totalorder %s29, %s31
      %p38 = scmp.eq.s32.totalorder %s26, 3
      %p39 = por %p37, %p38
      %p40 = scmp.ne.s32.totalorder %s31, %s32
      %p41 = scmp.eq.s32.totalorder %s26, 0
      %p42 = por %p40, %p41
      %p43 = scmp.ne.s32.totalorder %s31, %s32
      %p44 = scmp.eq.s32.totalorder %s27, 3
      %p45 = por %p43, %p44
      %p47 = scmp.ne.s32.totalorder %s32, %s46
      %p48 = scmp.eq.s32.totalorder %s27, 0
      %p49 = por %p47, %p48
      %s50 = ssub.s32 %s21, %s28
      %p51 = scmp.eq.s32.totalorder %s50, 0
      %s53 = sadd.s32 %s52, 1
      %s54 = scalar_select %p51, %s52, %s53
      %p57 = pneg %p51
      %p58 = scmp.eq.s32.totalorder %s21, 3
      %p59 = por %p57, %p58
      %p60 = scmp.ne.s32.totalorder %s52, %s55
      %p61 = scmp.eq.s32.totalorder %s21, 0
      %p62 = por %p60, %p61
      %p63 = scmp.ne.s32.totalorder %s52, %s55
      %p64 = scmp.eq.s32.totalorder %s26, 3
      %p65 = por %p63, %p64
      %p66 = scmp.ne.s32.totalorder %s55, %s56
      %p67 = scmp.eq.s32.totalorder %s26, 0
      %p68 = por %p66, %p67
      %p69 = scmp.ne.s32.totalorder %s55, %s56
      %p70 = scmp.eq.s32.totalorder %s27, 3
      %p71 = por %p69, %p70
      %p73 = scmp.ne.s32.totalorder %s56, %s72
      %p74 = scmp.eq.s32.totalorder %s27, 0
      %p75 = por %p73, %p74
      %s77 = sadd.s32 %s76, 1
      %p80 = scmp.eq.s32.totalorder %s21, 3
      %p81 = scmp.ne.s32.totalorder %s76, %s78
      %p82 = scmp.eq.s32.totalorder %s21, 0
      %p83 = por %p81, %p82
      %p84 = scmp.ne.s32.totalorder %s76, %s78
      %p85 = scmp.eq.s32.totalorder %s26, 3
      %p86 = por %p84, %p85
      %p87 = scmp.ne.s32.totalorder %s78, %s79
      %p88 = scmp.eq.s32.totalorder %s26, 0
      %p89 = por %p87, %p88
      %p90 = scmp.ne.s32.totalorder %s78, %s79
      %p91 = scmp.eq.s32.totalorder %s27, 3
      %p92 = por %p90, %p91
      %p94 = scmp.ne.s32.totalorder %s79, %s93
      %p95 = scmp.eq.s32.totalorder %s27, 0
      %p96 = por %p94, %p95
      %s98 = sadd.s32 %s97, 1
      %p101 = scmp.eq.s32.totalorder %s21, 3
      %p102 = scmp.ne.s32.totalorder %s97, %s99
      %p103 = scmp.eq.s32.totalorder %s21, 0
      %p104 = por %p102, %p103
      %p105 = scmp.ne.s32.totalorder %s97, %s99
      %p106 = scmp.eq.s32.totalorder %s26, 3
      %p107 = por %p105, %p106
      %p108 = scmp.ne.s32.totalorder %s99, %s100
      %p109 = scmp.eq.s32.totalorder %s26, 0
      %p110 = por %p108, %p109
      %p111 = scmp.ne.s32.totalorder %s99, %s100
      %p112 = scmp.eq.s32.totalorder %s27, 3
      %p113 = por %p111, %p112
      %p115 = scmp.ne.s32.totalorder %s100, %s114
      %p116 = scmp.eq.s32.totalorder %s27, 0
      %p117 = por %p115, %p116
      %s119 = sadd.s32 %s118, 1
      %p122 = scmp.eq.s32.totalorder %s21, 3
      %p123 = scmp.ne.s32.totalorder %s118, %s120
      %p124 = scmp.eq.s32.totalorder %s21, 0
      %p125 = por %p123, %p124
      %p126 = scmp.ne.s32.totalorder %s118, %s120
      %p127 = scmp.eq.s32.totalorder %s26, 3
      %p128 = por %p126, %p127
      %p129 = scmp.ne.s32.totalorder %s120, %s121
      %p130 = scmp.eq.s32.totalorder %s26, 0
      %p131 = por %p129, %p130
      %p132 = scmp.ne.s32.totalorder %s120, %s121
      %p133 = scmp.eq.s32.totalorder %s27, 3
      %p134 = por %p132, %p133
      %p136 = scmp.ne.s32.totalorder %s121, %s135
      %p137 = scmp.eq.s32.totalorder %s27, 0
      %p138 = por %p136, %p137
      %s140 = sadd.s32 %s139, 1
      %p143 = scmp.eq.s32.totalorder %s21, 3
      %p144 = scmp.ne.s32.totalorder %s139, %s141
      %p145 = scmp.eq.s32.totalorder %s21, 0
      %p146 = por %p144, %p145
      %p147 = scmp.ne.s32.totalorder %s139, %s141
      %p148 = scmp.eq.s32.totalorder %s26, 3
      %p149 = por %p147, %p148
      %p150 = scmp.ne.s32.totalorder %s141, %s142
      %p151 = scmp.eq.s32.totalorder %s26, 0
      %p152 = por %p150, %p151
      %p153 = scmp.ne.s32.totalorder %s141, %s142
      %p154 = scmp.eq.s32.totalorder %s27, 3
      %p155 = por %p153, %p154
      %p157 = scmp.ne.s32.totalorder %s142, %s156
      %p158 = scmp.eq.s32.totalorder %s27, 0
      %p159 = por %p157, %p158
      %s161 = sadd.s32 %s160, 1
      %p164 = scmp.eq.s32.totalorder %s21, 3
      %p165 = scmp.ne.s32.totalorder %s160, %s162
      %p166 = scmp.eq.s32.totalorder %s21, 0
      %p167 = por %p165, %p166
      %p168 = scmp.ne.s32.totalorder %s160, %s162
      %p169 = scmp.eq.s32.totalorder %s26, 3
      %p170 = por %p168, %p169
      %p171 = scmp.ne.s32.totalorder %s162, %s163
      %p172 = scmp.eq.s32.totalorder %s26, 0
      %p173 = por %p171, %p172
      %p174 = scmp.ne.s32.totalorder %s162, %s163
      %p175 = scmp.eq.s32.totalorder %s27, 3
      %p176 = por %p174, %p175
      %p178 = scmp.ne.s32.totalorder %s163, %s177
      %p179 = scmp.eq.s32.totalorder %s27, 0
      %p180 = por %p178, %p179
      %s182 = sadd.s32 %s181, 1
      %p185 = scmp.eq.s32.totalorder %s21, 3
      %p186 = scmp.ne.s32.totalorder %s181, %s183
      %p187 = scmp.eq.s32.totalorder %s21, 0
      %p188 = por %p186, %p187
      %p189 = scmp.ne.s32.totalorder %s181, %s183
      %p190 = scmp.eq.s32.totalorder %s26, 3
      %p191 = por %p189, %p190
      %p192 = scmp.ne.s32.totalorder %s183, %s184
      %p193 = scmp.eq.s32.totalorder %s26, 0
      %p194 = por %p192, %p193
      %p195 = scmp.ne.s32.totalorder %s183, %s184
      %p196 = scmp.eq.s32.totalorder %s27, 3
      %p197 = por %p195, %p196
      %p199 = scmp.ne.s32.totalorder %s184, %s198
      %p200 = scmp.eq.s32.totalorder %s27, 0
      %p201 = por %p199, %p200
      %s203 = sadd.s32 %s202, 1
      %p206 = scmp.eq.s32.totalorder %s21, 3
      %p207 = scmp.ne.s32.totalorder %s202, %s204
      %p208 = scmp.eq.s32.totalorder %s21, 0
      %p209 = por %p207, %p208
      %p210 = scmp.ne.s32.totalorder %s202, %s204
      %p211 = scmp.eq.s32.totalorder %s26, 3
      %p212 = por %p210, %p211
      %p213 = scmp.ne.s32.totalorder %s204, %s205
      %p214 = scmp.eq.s32.totalorder %s26, 0
      %p215 = por %p213, %p214
      %p216 = scmp.ne.s32.totalorder %s204, %s205
      %p217 = scmp.eq.s32.totalorder %s27, 3
      %p218 = por %p216, %p217
      %p220 = scmp.ne.s32.totalorder %s205, %s219
      %p221 = scmp.eq.s32.totalorder %s27, 0
      %p222 = por %p220, %p221
      %s224 = sadd.s32 %s223, 1
      %p227 = scmp.eq.s32.totalorder %s21, 3
      %p228 = scmp.ne.s32.totalorder %s223, %s225
      %p229 = scmp.eq.s32.totalorder %s21, 0
      %p230 = por %p228, %p229
      %p231 = scmp.ne.s32.totalorder %s223, %s225
      %p232 = scmp.eq.s32.totalorder %s26, 3
      %p233 = por %p231, %p232
      %p234 = scmp.ne.s32.totalorder %s225, %s226
      %p235 = scmp.eq.s32.totalorder %s26, 0
      %p236 = por %p234, %p235
      %p237 = scmp.ne.s32.totalorder %s225, %s226
      %p238 = scmp.eq.s32.totalorder %s27, 3
      %p239 = por %p237, %p238
      %p241 = scmp.ne.s32.totalorder %s226, %s240
      %p242 = scmp.eq.s32.totalorder %s27, 0
      %p243 = por %p241, %p242
      %p244 = scmp.le.s32.totalorder 1, %s21
      %p245 = scmp.lt.s32.totalorder %s21, 5
      %p246 = pnand %p244, %p245
      %p247 = pneg %p246
      // Predicated region
      $region9: #{tpu_custom_call.1} parent=5 // pred_check
        _
      $region10: #{tpu_custom_call.1} parent=5 // pred_check_branch
        %249 = sbr.rel (%p246) target = $region12
      $region11: #{tpu_custom_call.1} parent=5 // pred_region
        %s250 = ssub.s32 %s21, 1
        // Predicated region
        $region13: #{tpu_custom_call.1} parent=11 // pred_check
          %p251 = pneg %p42
        $region14: #{tpu_custom_call.1} parent=11 // pred_check_branch
          %253 = sbr.rel (%p251) target = $region16
        $region15: #{tpu_custom_call.1} parent=11 // pred_region
          %s255 = ssub.s32 1024, 1024
          %256 = vsyncadd [#allocation4], %s255
          %s257 = sshll.u32 [#allocation3], 4
          %s258 = int_to_ptr.vmem [resolvable:$true] %s257
          %263 = dma.hbm_to_vmem [thread:$0]  %s0, 1024, %s258, [#allocation4], 512, 512, 32
        $region16: #{tpu_custom_call.1} parent=11 // pred_fallthru
          _
        // Predicated region
        $region17: #{tpu_custom_call.1} parent=11 // pred_check
          %p264 = pneg %p89
        $region18: #{tpu_custom_call.1} parent=11 // pred_check_branch
          %266 = sbr.rel (%p264) target = $region20
        $region19: #{tpu_custom_call.1} parent=11 // pred_region
          _
        $region20: #{tpu_custom_call.1} parent=11 // pred_fallthru
          _
        // Predicated region
        $region21: #{tpu_custom_call.1} parent=11 // pred_check
          %p267 = pneg %p110
        $region22: #{tpu_custom_call.1} parent=11 // pred_check_branch
          %269 = sbr.rel (%p267) target = $region24
        $region23: #{tpu_custom_call.1} parent=11 // pred_region
          _
        $region24: #{tpu_custom_call.1} parent=11 // pred_fallthru
          _
        // Predicated region
        $region25: #{tpu_custom_call.1} parent=11 // pred_check
          %p270 = pneg %p131
        $region26: #{tpu_custom_call.1} parent=11 // pred_check_branch
          %272 = sbr.rel (%p270) target = $region28
        $region27: #{tpu_custom_call.1} parent=11 // pred_region
          %s274 = ssub.s32 2048, 2048
          %275 = vsyncadd [#allocation7], %s274
          %s276 = sshll.u32 [#allocation8], 4
          %s277 = int_to_ptr.vmem [resolvable:$true] %s276
          %282 = dma.hbm_to_vmem [thread:$0]  %s4, 2048, %s277, [#allocation7], 64, 64, 4
        $region28: #{tpu_custom_call.1} parent=11 // pred_fallthru
          _
        // Predicated region
        $region29: #{tpu_custom_call.1} parent=11 // pred_check
          %p283 = pneg %p152
        $region30: #{tpu_custom_call.1} parent=11 // pred_check_branch
          %285 = sbr.rel (%p283) target = $region32
        $region31: #{tpu_custom_call.1} parent=11 // pred_region
          _
        $region32: #{tpu_custom_call.1} parent=11 // pred_fallthru
          _
        // Predicated region
        $region33: #{tpu_custom_call.1} parent=11 // pred_check
          %p286 = pneg %p173
        $region34: #{tpu_custom_call.1} parent=11 // pred_check_branch
          %288 = sbr.rel (%p286) target = $region36
        $region35: #{tpu_custom_call.1} parent=11 // pred_region
          _
        $region36: #{tpu_custom_call.1} parent=11 // pred_fallthru
          _
        // Predicated region
        $region37: #{tpu_custom_call.1} parent=11 // pred_check
          %p289 = pneg %p194
        $region38: #{tpu_custom_call.1} parent=11 // pred_check_branch
          %291 = sbr.rel (%p289) target = $region40
        $region39: #{tpu_custom_call.1} parent=11 // pred_region
          %s293 = ssub.s32 1024, 1024
          %294 = vsyncadd [#allocation10], %s293
          %s295 = sshll.u32 [#allocation9], 4
          %s296 = int_to_ptr.vmem [resolvable:$true] %s295
          %301 = dma.hbm_to_vmem [thread:$0]  %s7, 1024, %s296, [#allocation10], 64, 64, 4
        $region40: #{tpu_custom_call.1} parent=11 // pred_fallthru
          _
        // Predicated region
        $region41: #{tpu_custom_call.1} parent=11 // pred_check
          %p302 = pneg %p215
        $region42: #{tpu_custom_call.1} parent=11 // pred_check_branch
          %304 = sbr.rel (%p302) target = $region44
        $region43: #{tpu_custom_call.1} parent=11 // pred_region
          _
        $region44: #{tpu_custom_call.1} parent=11 // pred_fallthru
          _
      $region12: #{tpu_custom_call.1} parent=5 // pred_fallthru
        _
      %p305 = scmp.lt.s32.totalorder %s21, 4
      // Predicated region
      $region45: #{tpu_custom_call.1} parent=5 // pred_check
        %p306 = pneg %p305
      $region46: #{tpu_custom_call.1} parent=5 // pred_check_branch
        %308 = sbr.rel (%p306) target = $region48
      $region47: #{tpu_custom_call.1} parent=5 // pred_region
        // Predicated region
        $region49: #{tpu_custom_call.1} parent=47 // pred_check
          %p309 = pneg %p62
        $region50: #{tpu_custom_call.1} parent=47 // pred_check_branch
          %311 = sbr.rel (%p309) target = $region52
        $region51: #{tpu_custom_call.1} parent=47 // pred_region
          %s312 = sand.u32 %s21, 1
          %s313 = scalar_lea.sflag [#allocation7], %s312
          %s314 = sand.u32 %s52, 1
          %s315 = smul.addr %s314, 256
          %s316 = scalar_lea.vmem [#allocation6], %s315
          %s317 = smul.u32 32, %s21
          %s319 = ssub.s32 4096, 4096
          %320 = vsyncadd %s313, %s319
          %s321 = smul.addr %s317, 2
          %s322 = smul.addr %s321, 64
          %s323 = scalar_lea.hbm %s1, %s322
          %s324 = sshll.u32 %s316, 4
          %s325 = int_to_ptr.vmem [resolvable:$true] %s324
          %330 = dma.hbm_to_vmem [thread:$0]  %s323, 4096, %s325, %s313, 128, 128, 8
        $region52: #{tpu_custom_call.1} parent=47 // pred_fallthru
          _
      $region48: #{tpu_custom_call.1} parent=5 // pred_fallthru
        _
      %p331 = scmp.le.s32.totalorder 1, %s21
      %p332 = scmp.lt.s32.totalorder %s21, 5
      %p333 = pnand %p331, %p332
      %p334 = pneg %p333
      // Predicated region
      $region53: #{tpu_custom_call.1} parent=5 // pred_check
        _
      $region54: #{tpu_custom_call.1} parent=5 // pred_check_branch
        %336 = sbr.rel (%p333) target = $region56
      $region55: #{tpu_custom_call.1} parent=5 // pred_region
        %s337 = ssub.s32 %s21, 1
        // Predicated region
        $region57: #{tpu_custom_call.1} parent=55 // pred_check
          %p338 = pneg %p42
        $region58: #{tpu_custom_call.1} parent=55 // pred_check_branch
          %340 = sbr.rel (%p338) target = $region60
        $region59: #{tpu_custom_call.1} parent=55 // pred_region
          %341 = dma.done [#allocation4], 1024
        $region60: #{tpu_custom_call.1} parent=55 // pred_fallthru
          _
        %s342 = sand.u32 %s26, 1
        %s343 = scalar_lea.sflag [#allocation7], %s342
        %s344 = sand.u32 %s55, 1
        %s345 = smul.addr %s344, 256
        %s346 = scalar_lea.vmem [#allocation6], %s345
        // Predicated region
        $region61: #{tpu_custom_call.1} parent=55 // pred_check
          %p347 = pneg %p68
        $region62: #{tpu_custom_call.1} parent=55 // pred_check_branch
          %349 = sbr.rel (%p347) target = $region64
        $region63: #{tpu_custom_call.1} parent=55 // pred_region
          %350 = dma.done %s343, 4096
        $region64: #{tpu_custom_call.1} parent=55 // pred_fallthru
          _
        // Predicated region
        $region65: #{tpu_custom_call.1} parent=55 // pred_check
          %p351 = pneg %p131
        $region66: #{tpu_custom_call.1} parent=55 // pred_check_branch
          %353 = sbr.rel (%p351) target = $region68
        $region67: #{tpu_custom_call.1} parent=55 // pred_region
          %354 = dma.done [#allocation7], 2048
        $region68: #{tpu_custom_call.1} parent=55 // pred_fallthru
          _
        // Predicated region
        $region69: #{tpu_custom_call.1} parent=55 // pred_check
          %p355 = pneg %p194
        $region70: #{tpu_custom_call.1} parent=55 // pred_check_branch
          %357 = sbr.rel (%p355) target = $region72
        $region71: #{tpu_custom_call.1} parent=55 // pred_region
          %358 = dma.done [#allocation10], 1024
        $region72: #{tpu_custom_call.1} parent=55 // pred_fallthru
          _
        %p359 = pneg %p42
        %p360 = pneg %p39
        %s361 = sand.u32 %s26, 1
        %s362 = scalar_lea.sflag [#allocation7], %s361
        %s363 = sand.u32 %s55, 1
        %s364 = smul.addr %s363, 256
        %s365 = scalar_lea.vmem [#allocation6], %s364
        %p366 = pneg %p68
        %p367 = pneg %p65
        %p368 = pneg %p89
        %p369 = pneg %p86
        %p370 = pneg %p110
        %p371 = pneg %p107
        %p372 = pneg %p131
        %p373 = pneg %p128
        %p374 = pneg %p152
        %p375 = pneg %p149
        %p376 = pneg %p173
        %p377 = pneg %p170
        %p378 = pneg %p194
        %p379 = pneg %p191
        %p380 = pneg %p215
        %p381 = pneg %p212
        %p382 = pneg %p236
        %p383 = pneg %p233
        %s384 = smul.u32 32, %s26
        %p386 = scmp.eq.s32.totalorder %s26, 0
        // Predicated region
        $region73: #{tpu_custom_call.1} parent=55 // pred_check
          %p387 = pneg %p386
        $region74: #{tpu_custom_call.1} parent=55 // pred_check_branch
          %389 = sbr.rel (%p387) target = $region76
        $region75: #{tpu_custom_call.1} parent=55 // pred_region
          %390 = vst [vmem:[#allocation2] sm:$0xff] 0.0
          %391 = vst [vmem:[#allocation2 + $0x8] sm:$0xff] 0.0
          %392 = vst [vmem:[#allocation2 + $0x10] sm:$0xff] 0.0
          %393 = vst [vmem:[#allocation2 + $0x18] sm:$0xff] 0.0
        $region76: #{tpu_custom_call.1} parent=55 // pred_fallthru
          _
        %s394 = smul.u32 %s26, 256
        %s395 = sshra.s32 %s394, 7
        %s396 = sand.u32 %s394, 127
        %s397 = smul.addr %s395, 4
        %s398 = scalar_lea.vmem [#allocation3], %s397
        %v399 = vld [vmem:[%s398] sm:$0xff]
        %v400 = vld [vmem:[%s398 + $0x20] sm:$0xff]
        %v401 = vld [vmem:[#allocation2] sm:$0xff]
        %v402 = vld [vmem:[#allocation2 + $0x8] sm:$0xff]
        %v403 = vld [vmem:[#allocation2 + $0x10] sm:$0xff]
        %v404 = vld [vmem:[#allocation2 + $0x18] sm:$0xff]
        %v405 = vld [vmem:[%s346] sm:$0xff]
        %v406 = vld [vmem:[%s346 + $0x8] sm:$0xff]
        %v407 = vld [vmem:[%s346 + $0x10] sm:$0xff]
        %v408 = vld [vmem:[%s346 + $0x18] sm:$0xff]
        %v409 = vld [vmem:[%s346 + $0x20] sm:$0xff]
        %v410 = vld [vmem:[%s346 + $0x28] sm:$0xff]
        %v411 = vld [vmem:[%s346 + $0x30] sm:$0xff]
        %v412 = vld [vmem:[%s346 + $0x38] sm:$0xff]
        %v413 = vld [vmem:[%s346 + $0x40] sm:$0xff]
        %v414 = vld [vmem:[%s346 + $0x48] sm:$0xff]
        %v415 = vld [vmem:[%s346 + $0x50] sm:$0xff]
        %v416 = vld [vmem:[%s346 + $0x58] sm:$0xff]
        %v417 = vld [vmem:[%s346 + $0x60] sm:$0xff]
        %v418 = vld [vmem:[%s346 + $0x68] sm:$0xff]
        %v419 = vld [vmem:[%s346 + $0x70] sm:$0xff]
        %v420 = vld [vmem:[%s346 + $0x78] sm:$0xff]
        %v421 = vld [vmem:[%s346 + $0x80] sm:$0xff]
        %v422 = vld [vmem:[%s346 + $0x88] sm:$0xff]
        %v423 = vld [vmem:[%s346 + $0x90] sm:$0xff]
        %v424 = vld [vmem:[%s346 + $0x98] sm:$0xff]
        %v425 = vld [vmem:[%s346 + $0xa0] sm:$0xff]
        %v426 = vld [vmem:[%s346 + $0xa8] sm:$0xff]
        %v427 = vld [vmem:[%s346 + $0xb0] sm:$0xff]
        %v428 = vld [vmem:[%s346 + $0xb8] sm:$0xff]
        %v429 = vld [vmem:[%s346 + $0xc0] sm:$0xff]
        %v430 = vld [vmem:[%s346 + $0xc8] sm:$0xff]
        %v431 = vld [vmem:[%s346 + $0xd0] sm:$0xff]
        %v432 = vld [vmem:[%s346 + $0xd8] sm:$0xff]
        %v433 = vld [vmem:[%s346 + $0xe0] sm:$0xff]
        %v434 = vld [vmem:[%s346 + $0xe8] sm:$0xff]
        %v435 = vld [vmem:[%s346 + $0xf0] sm:$0xff]
        %v436 = vld [vmem:[%s346 + $0xf8] sm:$0xff]
        %v439 = vunpack.c.l.b16 %v399
        %v440 = vunpack.c.h.b16 %v399
        %v441 = vunpack.c.l.b16 %v400
        %v442 = vunpack.c.h.b16 %v400
        %v443 = vpack.c.b16 %v441, %v439
        %v444 = vpack.c.b16 %v442, %v440
        %v479 = vunpack.c.l.b16 %v405
        %v480 = vunpack.c.h.b16 %v405
        %v481 = vunpack.c.l.b16 %v406
        %v482 = vunpack.c.h.b16 %v406
        %v483 = vunpack.c.l.b16 %v407
        %v484 = vunpack.c.h.b16 %v407
        %v485 = vunpack.c.l.b16 %v408
        %v486 = vunpack.c.h.b16 %v408
        %v487 = vunpack.c.l.b16 %v409
        %v488 = vunpack.c.h.b16 %v409
        %v489 = vunpack.c.l.b16 %v410
        %v490 = vunpack.c.h.b16 %v410
        %v491 = vunpack.c.l.b16 %v411
        %v492 = vunpack.c.h.b16 %v411
        %v493 = vunpack.c.l.b16 %v412
        %v494 = vunpack.c.h.b16 %v412
        %v495 = vunpack.c.l.b16 %v413
        %v496 = vunpack.c.h.b16 %v413
        %v497 = vunpack.c.l.b16 %v414
        %v498 = vunpack.c.h.b16 %v414
        %v499 = vunpack.c.l.b16 %v415
        %v500 = vunpack.c.h.b16 %v415
        %v501 = vunpack.c.l.b16 %v416
        %v502 = vunpack.c.h.b16 %v416
        %v503 = vunpack.c.l.b16 %v417
        %v504 = vunpack.c.h.b16 %v417
        %v505 = vunpack.c.l.b16 %v418
        %v506 = vunpack.c.h.b16 %v418
        %v507 = vunpack.c.l.b16 %v419
        %v508 = vunpack.c.h.b16 %v419
        %v509 = vunpack.c.l.b16 %v420
        %v510 = vunpack.c.h.b16 %v420
        %v511 = vunpack.c.l.b16 %v421
        %v512 = vunpack.c.h.b16 %v421
        %v513 = vunpack.c.l.b16 %v422
        %v514 = vunpack.c.h.b16 %v422
        %v515 = vunpack.c.l.b16 %v423
        %v516 = vunpack.c.h.b16 %v423
        %v517 = vunpack.c.l.b16 %v424
        %v518 = vunpack.c.h.b16 %v424
        %v519 = vunpack.c.l.b16 %v425
        %v520 = vunpack.c.h.b16 %v425
        %v521 = vunpack.c.l.b16 %v426
        %v522 = vunpack.c.h.b16 %v426
        %v523 = vunpack.c.l.b16 %v427
        %v524 = vunpack.c.h.b16 %v427
        %v525 = vunpack.c.l.b16 %v428
        %v526 = vunpack.c.h.b16 %v428
        %v527 = vunpack.c.l.b16 %v429
        %v528 = vunpack.c.h.b16 %v429
        %v529 = vunpack.c.l.b16 %v430
        %v530 = vunpack.c.h.b16 %v430
        %v531 = vunpack.c.l.b16 %v431
        %v532 = vunpack.c.h.b16 %v431
        %v533 = vunpack.c.l.b16 %v432
        %v534 = vunpack.c.h.b16 %v432
        %v535 = vunpack.c.l.b16 %v433
        %v536 = vunpack.c.h.b16 %v433
        %v537 = vunpack.c.l.b16 %v434
        %v538 = vunpack.c.h.b16 %v434
        %v539 = vunpack.c.l.b16 %v435
        %v540 = vunpack.c.h.b16 %v435
        %v541 = vunpack.c.l.b16 %v436
        %v542 = vunpack.c.h.b16 %v436
        %v543 = vpack.c.b16 %v481, %v479
        %v544 = vpack.c.b16 %v482, %v480
        %v545 = vpack.c.b16 %v485, %v483
        %v546 = vpack.c.b16 %v486, %v484
        %v547 = vpack.c.b16 %v489, %v487
        %v548 = vpack.c.b16 %v490, %v488
        %v549 = vpack.c.b16 %v493, %v491
        %v550 = vpack.c.b16 %v494, %v492
        %v551 = vpack.c.b16 %v497, %v495
        %v552 = vpack.c.b16 %v498, %v496
        %v553 = vpack.c.b16 %v501, %v499
        %v554 = vpack.c.b16 %v502, %v500
        %v555 = vpack.c.b16 %v505, %v503
        %v556 = vpack.c.b16 %v506, %v504
        %v557 = vpack.c.b16 %v509, %v507
        %v558 = vpack.c.b16 %v510, %v508
        %v559 = vpack.c.b16 %v513, %v511
        %v560 = vpack.c.b16 %v514, %v512
        %v561 = vpack.c.b16 %v517, %v515
        %v562 = vpack.c.b16 %v518, %v516
        %v563 = vpack.c.b16 %v521, %v519
        %v564 = vpack.c.b16 %v522, %v520
        %v565 = vpack.c.b16 %v525, %v523
        %v566 = vpack.c.b16 %v526, %v524
        %v567 = vpack.c.b16 %v529, %v527
        %v568 = vpack.c.b16 %v530, %v528
        %v569 = vpack.c.b16 %v533, %v531
        %v570 = vpack.c.b16 %v534, %v532
        %v571 = vpack.c.b16 %v537, %v535
        %v572 = vpack.c.b16 %v538, %v536
        %v573 = vpack.c.b16 %v541, %v539
        %v574 = vpack.c.b16 %v542, %v540
        %607 = vmatprep.subr.bf16.mxu0 %v544
        %608 = vmatpush1.bf16.msra.mxu0 %v543
        %609 = vmatprep.subr.bf16.mxu0 %v546
        %610 = vmatpush1.bf16.msra.mxu0 %v545
        %611 = vmatprep.subr.bf16.mxu0 %v548
        %612 = vmatpush1.bf16.msra.mxu0 %v547
        %613 = vmatprep.subr.bf16.mxu0 %v550
        %614 = vmatpush1.bf16.msra.mxu0 %v549
        %615 = vmatprep.subr.bf16.mxu0 %v552
        %616 = vmatpush1.bf16.msra.mxu0 %v551
        %617 = vmatprep.subr.bf16.mxu0 %v554
        %618 = vmatpush1.bf16.msra.mxu0 %v553
        %619 = vmatprep.subr.bf16.mxu0 %v556
        %620 = vmatpush1.bf16.msra.mxu0 %v555
        %621 = vmatprep.subr.bf16.mxu0 %v558
        %622 = vmatpush1.bf16.msra.mxu0 %v557
        %623 = vmatprep.subr.bf16.mxu0 %v560
        %624 = vmatpush1.bf16.msra.mxu0 %v559
        %625 = vmatprep.subr.bf16.mxu0 %v562
        %626 = vmatpush1.bf16.msra.mxu0 %v561
        %627 = vmatprep.subr.bf16.mxu0 %v564
        %628 = vmatpush1.bf16.msra.mxu0 %v563
        %629 = vmatprep.subr.bf16.mxu0 %v566
        %630 = vmatpush1.bf16.msra.mxu0 %v565
        %631 = vmatprep.subr.bf16.mxu0 %v568
        %632 = vmatpush1.bf16.msra.mxu0 %v567
        %633 = vmatprep.subr.bf16.mxu0 %v570
        %634 = vmatpush1.bf16.msra.mxu0 %v569
        %635 = vmatprep.subr.bf16.mxu0 %v572
        %636 = vmatpush1.bf16.msra.mxu0 %v571
        %637 = vmatprep.subr.bf16.mxu0 %v574
        %638 = vmatpush1.bf16.msra.mxu0 %v573
        %639 = vmatprep.mubr.bf16.mxu0 %v444
        %640 = vmatmul.mubr.bf16.gmra.mrb[0].mxu0 %v443
        %v641 = vpop.f32.mrb[0].mxu0
        %v642 = vadd.f32 0.0, %v641
        %v643 = vpop.f32.mrb[0].mxu0
        %v644 = vadd.f32 0.0, %v643
        %v645 = vpop.f32.mrb[0].mxu0
        %v646 = vadd.f32 0.0, %v645
        %v647 = vpop.f32.mrb[0].mxu0
        %v648 = vadd.f32 0.0, %v647
        %649 = vdwg.mxu0
        %v650 = vadd.f32 %v401, %v642
        %v651 = vadd.f32 %v402, %v644
        %v652 = vadd.f32 %v403, %v646
        %v653 = vadd.f32 %v404, %v648
        %654 = vst [vmem:[#allocation2] sm:$0xff] %v650
        %655 = vst [vmem:[#allocation2 + $0x8] sm:$0xff] %v651
        %656 = vst [vmem:[#allocation2 + $0x10] sm:$0xff] %v652
        %657 = vst [vmem:[#allocation2 + $0x18] sm:$0xff] %v653
        %p658 = scmp.eq.s32.totalorder %s26, 3
        // Predicated region
        $region77: #{tpu_custom_call.1} parent=55 // pred_check
          %p659 = pneg %p658
        $region78: #{tpu_custom_call.1} parent=55 // pred_check_branch
          %661 = sbr.rel (%p659) target = $region80
        $region79: #{tpu_custom_call.1} parent=55 // pred_region
          %v662 = vld [vmem:[#allocation2] sm:$0xff]
          %v663 = vld [vmem:[#allocation2 + $0x8] sm:$0xff]
          %v664 = vld [vmem:[#allocation2 + $0x10] sm:$0xff]
          %v665 = vld [vmem:[#allocation2 + $0x18] sm:$0xff]
          %v666 = vadd.f32 %v662, %v664
          %v667 = vrot.slane %v666, 4
          %v668 = vadd.f32 %v666, %v667
          %v669 = vrot.slane %v668, 2
          %v670 = vadd.f32 %v668, %v669
          %v671 = vrot.slane %v670, 1
          %v672 = vadd.f32 %v670, %v671
          %v673 = vadd.f32 %v663, %v665
          %v674 = vrot.slane %v673, 4
          %v675 = vadd.f32 %v673, %v674
          %v676 = vrot.slane %v675, 2
          %v677 = vadd.f32 %v675, %v676
          %v678 = vrot.slane %v677, 1
          %v679 = vadd.f32 %v677, %v678
          %v680 = vrcp.pop 16.0
          %v681 = vmul.f32 %v672, %v680
          %v682 = vmul.f32 %v679, %v680
          %v683 = vsub.f32 %v662, %v681
          %v684 = vsub.f32 %v663, %v682
          %v685 = vsub.f32 %v664, %v681
          %v686 = vsub.f32 %v665, %v682
          %v687 = vmul.f32 %v683, %v683
          %v688 = vmul.f32 %v684, %v684
          %v689 = vmul.f32 %v685, %v685
          %v690 = vmul.f32 %v686, %v686
          %v691 = vadd.f32 %v687, %v689
          %v692 = vrot.slane %v691, 4
          %v693 = vadd.f32 %v691, %v692
          %v694 = vrot.slane %v693, 2
          %v695 = vadd.f32 %v693, %v694
          %v696 = vrot.slane %v695, 1
          %v697 = vadd.f32 %v695, %v696
          %v698 = vadd.f32 %v688, %v690
          %v699 = vrot.slane %v698, 4
          %v700 = vadd.f32 %v698, %v699
          %v701 = vrot.slane %v700, 2
          %v702 = vadd.f32 %v700, %v701
          %v703 = vrot.slane %v702, 1
          %v704 = vadd.f32 %v702, %v703
          %v705 = vmul.f32 %v697, %v680
          %v706 = vmul.f32 %v704, %v680
          %v707 = vld [vmem:[%s2] sm:$0x3]
          %v708 = vadd.f32 %v705, 1e-05
          %v709 = vadd.f32 %v706, 1e-05
          %v710 = vrsqrt.pop %v708
          %v711 = vrsqrt.pop %v709
          %v714 = vcombine.low %v710, %v711
          %v716 = vunpack.c.l.s4 1966171168
          %v717 = vunpack.c.0.s8 %v716
          %v718 = vlaneseq
          %v719 = vshrl.u32 %v718, 7
          %v720 = vsub.s32 %v717, %v719
          %v721 = vrot.slane %v714, %v720
          %v723 = vunpack.c.l.s4 1966171168
          %v724 = vunpack.c.0.s8 %v723
          %v725 = vlaneseq
          %v726 = vshrl.u32 %v725, 7
          %v727 = vsub.s32 %v724, %v726
          %v728 = vrot.slane %v721, %v727
          %v730 = vmul.f32 %v707, %v728
          %v732 = vlaneseq
          %v733 = vshrl.u32 %v732, 7
          %v734 = vsub.s32 0, %v733
          %v735 = vrot.slane %v730, %v734
          %v736 = vlaneseq
          %v737 = vshrl.u32 %v736, 7
          %v738 = vsub.s32 1, %v737
          %v739 = vrot.slane %v730, %v738
          %v742 = vmul.f32 %v662, %v735
          %v743 = vmul.f32 %v663, %v739
          %v744 = vmul.f32 %v664, %v735
          %v745 = vmul.f32 %v665, %v739
          %v746 = vld [vmem:[%s3] sm:$0x3]
          %v747 = vmul.f32 %v681, %v735
          %v748 = vmul.f32 %v682, %v739
          %v751 = vcombine.low %v747, %v748
          %v753 = vunpack.c.l.s4 1966171168
          %v754 = vunpack.c.0.s8 %v753
          %v755 = vlaneseq
          %v756 = vshrl.u32 %v755, 7
          %v757 = vsub.s32 %v754, %v756
          %v758 = vrot.slane %v751, %v757
          %v760 = vunpack.c.l.s4 1966171168
          %v761 = vunpack.c.0.s8 %v760
          %v762 = vlaneseq
          %v763 = vshrl.u32 %v762, 7
          %v764 = vsub.s32 %v761, %v763
          %v765 = vrot.slane %v758, %v764
          %v767 = vsub.f32 %v746, %v765
          %v769 = vlaneseq
          %v770 = vshrl.u32 %v769, 7
          %v771 = vsub.s32 0, %v770
          %v772 = vrot.slane %v767, %v771
          %v773 = vlaneseq
          %v774 = vshrl.u32 %v773, 7
          %v775 = vsub.s32 1, %v774
          %v776 = vrot.slane %v767, %v775
          %v779 = vadd.f32 %v742, %v772
          %v780 = vadd.f32 %v743, %v776
          %v781 = vadd.f32 %v744, %v772
          %v782 = vadd.f32 %v745, %v776
          %v783 = vmax.f32 %v779, 0.0
          %v784 = vmax.f32 %v780, 0.0
          %v785 = vmax.f32 %v781, 0.0
          %v786 = vmax.f32 %v782, 0.0
          %v787 = vpack.c.bf16 %v785, %v783
          %v788 = vpack.c.bf16 %v786, %v784
          %v789 = vld [vmem:[#allocation8] sm:$0xf]
          %v790 = vld [vmem:[#allocation8 + $0x4] sm:$0xf]
          %v791 = vld [vmem:[#allocation8 + $0x8] sm:$0xf]
          %v792 = vld [vmem:[#allocation8 + $0xc] sm:$0xf]
          %v793 = vld [vmem:[#allocation8 + $0x10] sm:$0xf]
          %v794 = vld [vmem:[#allocation8 + $0x14] sm:$0xf]
          %v795 = vld [vmem:[#allocation8 + $0x18] sm:$0xf]
          %v796 = vld [vmem:[#allocation8 + $0x1c] sm:$0xf]
          %v797 = vld [vmem:[#allocation8 + $0x20] sm:$0xf]
          %v798 = vld [vmem:[#allocation8 + $0x24] sm:$0xf]
          %v799 = vld [vmem:[#allocation8 + $0x28] sm:$0xf]
          %v800 = vld [vmem:[#allocation8 + $0x2c] sm:$0xf]
          %v801 = vld [vmem:[#allocation8 + $0x30] sm:$0xf]
          %v802 = vld [vmem:[#allocation8 + $0x34] sm:$0xf]
          %v803 = vld [vmem:[#allocation8 + $0x38] sm:$0xf]
          %v804 = vld [vmem:[#allocation8 + $0x3c] sm:$0xf]
          %v805 = vld [vmem:[#allocation8 + $0x40] sm:$0xf]
          %v806 = vld [vmem:[#allocation8 + $0x44] sm:$0xf]
          %v807 = vld [vmem:[#allocation8 + $0x48] sm:$0xf]
          %v808 = vld [vmem:[#allocation8 + $0x4c] sm:$0xf]
          %v809 = vld [vmem:[#allocation8 + $0x50] sm:$0xf]
          %v810 = vld [vmem:[#allocation8 + $0x54] sm:$0xf]
          %v811 = vld [vmem:[#allocation8 + $0x58] sm:$0xf]
          %v812 = vld [vmem:[#allocation8 + $0x5c] sm:$0xf]
          %v813 = vld [vmem:[#allocation8 + $0x60] sm:$0xf]
          %v814 = vld [vmem:[#allocation8 + $0x64] sm:$0xf]
          %v815 = vld [vmem:[#allocation8 + $0x68] sm:$0xf]
          %v816 = vld [vmem:[#allocation8 + $0x6c] sm:$0xf]
          %v817 = vld [vmem:[#allocation8 + $0x70] sm:$0xf]
          %v818 = vld [vmem:[#allocation8 + $0x74] sm:$0xf]
          %v819 = vld [vmem:[#allocation8 + $0x78] sm:$0xf]
          %v820 = vld [vmem:[#allocation8 + $0x7c] sm:$0xf]
          %v853 = vunpack.c.l.b16 %v789
          %v854 = vunpack.c.l.b16 %v790
          %v855 = vunpack.c.l.b16 %v791
          %v856 = vunpack.c.l.b16 %v792
          %v857 = vunpack.c.l.b16 %v793
          %v858 = vunpack.c.l.b16 %v794
          %v859 = vunpack.c.l.b16 %v795
          %v860 = vunpack.c.l.b16 %v796
          %v861 = vunpack.c.l.b16 %v797
          %v862 = vunpack.c.l.b16 %v798
          %v863 = vunpack.c.l.b16 %v799
          %v864 = vunpack.c.l.b16 %v800
          %v865 = vunpack.c.l.b16 %v801
          %v866 = vunpack.c.l.b16 %v802
          %v867 = vunpack.c.l.b16 %v803
          %v868 = vunpack.c.l.b16 %v804
          %v869 = vunpack.c.l.b16 %v805
          %v870 = vunpack.c.l.b16 %v806
          %v871 = vunpack.c.l.b16 %v807
          %v872 = vunpack.c.l.b16 %v808
          %v873 = vunpack.c.l.b16 %v809
          %v874 = vunpack.c.l.b16 %v810
          %v875 = vunpack.c.l.b16 %v811
          %v876 = vunpack.c.l.b16 %v812
          %v877 = vunpack.c.l.b16 %v813
          %v878 = vunpack.c.l.b16 %v814
          %v879 = vunpack.c.l.b16 %v815
          %v880 = vunpack.c.l.b16 %v816
          %v881 = vunpack.c.l.b16 %v817
          %v882 = vunpack.c.l.b16 %v818
          %v883 = vunpack.c.l.b16 %v819
          %v884 = vunpack.c.l.b16 %v820
          %v885 = vpack.c.b16 %v854, %v853
          %v886 = vpack.c.b16 %v856, %v855
          %v887 = vpack.c.b16 %v858, %v857
          %v888 = vpack.c.b16 %v860, %v859
          %v889 = vpack.c.b16 %v862, %v861
          %v890 = vpack.c.b16 %v864, %v863
          %v891 = vpack.c.b16 %v866, %v865
          %v892 = vpack.c.b16 %v868, %v867
          %v893 = vpack.c.b16 %v870, %v869
          %v894 = vpack.c.b16 %v872, %v871
          %v895 = vpack.c.b16 %v874, %v873
          %v896 = vpack.c.b16 %v876, %v875
          %v897 = vpack.c.b16 %v878, %v877
          %v898 = vpack.c.b16 %v880, %v879
          %v899 = vpack.c.b16 %v882, %v881
          %v900 = vpack.c.b16 %v884, %v883
          %917 = vmatprep.subr.bf16.mxu0 0
          %918 = vmatpush1.bf16.msra.mxu0 %v885
          %919 = vmatprep.subr.bf16.mxu0 0
          %920 = vmatpush1.bf16.msra.mxu0 %v886
          %921 = vmatprep.subr.bf16.mxu0 0
          %922 = vmatpush1.bf16.msra.mxu0 %v887
          %923 = vmatprep.subr.bf16.mxu0 0
          %924 = vmatpush1.bf16.msra.mxu0 %v888
          %925 = vmatprep.subr.bf16.mxu0 0
          %926 = vmatpush1.bf16.msra.mxu0 %v889
          %927 = vmatprep.subr.bf16.mxu0 0
          %928 = vmatpush1.bf16.msra.mxu0 %v890
          %929 = vmatprep.subr.bf16.mxu0 0
          %930 = vmatpush1.bf16.msra.mxu0 %v891
          %931 = vmatprep.subr.bf16.mxu0 0
          %932 = vmatpush1.bf16.msra.mxu0 %v892
          %933 = vmatprep.subr.bf16.mxu0 0
          %934 = vmatpush1.bf16.msra.mxu0 %v893
          %935 = vmatprep.subr.bf16.mxu0 0
          %936 = vmatpush1.bf16.msra.mxu0 %v894
          %937 = vmatprep.subr.bf16.mxu0 0
          %938 = vmatpush1.bf16.msra.mxu0 %v895
          %939 = vmatprep.subr.bf16.mxu0 0
          %940 = vmatpush1.bf16.msra.mxu0 %v896
          %941 = vmatprep.subr.bf16.mxu0 0
          %942 = vmatpush1.bf16.msra.mxu0 %v897
          %943 = vmatprep.subr.bf16.mxu0 0
          %944 = vmatpush1.bf16.msra.mxu0 %v898
          %945 = vmatprep.subr.bf16.mxu0 0
          %946 = vmatpush1.bf16.msra.mxu0 %v899
          %947 = vmatprep.subr.bf16.mxu0 0
          %948 = vmatpush1.bf16.msra.mxu0 %v900
          %949 = vmatprep.mubr.bf16.mxu0 %v788
          %950 = vmatmul.mubr.bf16.gmra.mrb[0].mxu0 %v787
          %v951 = vpop.f32.mrb[0].mxu0
          %v952 = vadd.f32 0.0, %v951
          %v953 = vpop.f32.mrb[0].mxu0
          %v954 = vpop.f32.mrb[0].mxu0
          %v955 = vadd.f32 0.0, %v954
          %v956 = vpop.f32.mrb[0].mxu0
          %957 = vdwg.mxu0
          %v958 = vadd.f32 %v952, %v955
          %v959 = vrot.slane %v958, 4
          %v960 = vadd.f32 %v958, %v959
          %v961 = vrot.slane %v960, 2
          %v962 = vadd.f32 %v960, %v961
          %v963 = vrot.slane %v962, 1
          %v964 = vadd.f32 %v962, %v963
          %v965 = vmul.f32 %v964, %v680
          %v966 = vsub.f32 %v952, %v965
          %v967 = vsub.f32 %v955, %v965
          %v968 = vmul.f32 %v966, %v966
          %v969 = vmul.f32 %v967, %v967
          %v970 = vadd.f32 %v968, %v969
          %v971 = vrot.slane %v970, 4
          %v972 = vadd.f32 %v970, %v971
          %v973 = vrot.slane %v972, 2
          %v974 = vadd.f32 %v972, %v973
          %v975 = vrot.slane %v974, 1
          %v976 = vadd.f32 %v974, %v975
          %v977 = vmul.f32 %v976, %v680
          %v978 = vld [vmem:[%s5] sm:$0x1]
          %v979 = vadd.f32 %v977, 1e-05
          %v980 = vrsqrt.pop %v979
          %v981 = vmul.f32 %v978, %v980
          %v983 = vlaneseq
          %v984 = vshrl.u32 %v983, 7
          %v985 = vsub.s32 0, %v984
          %v986 = vrot.slane %v981, %v985
          %v988 = vmul.f32 %v952, %v986
          %v989 = vmul.f32 %v955, %v986
          %v990 = vld [vmem:[%s6] sm:$0x1]
          %v991 = vmul.f32 %v965, %v981
          %v992 = vsub.f32 %v990, %v991
          %v994 = vlaneseq
          %v995 = vshrl.u32 %v994, 7
          %v996 = vsub.s32 0, %v995
          %v997 = vrot.slane %v992, %v996
          %v999 = vadd.f32 %v988, %v997
          %v1000 = vadd.f32 %v989, %v997
          %v1001 = vmax.f32 %v999, 0.0
          %v1002 = vmax.f32 %v1000, 0.0
          %v1003 = vpack.c.bf16 %v1002, %v1001
          %v1004 = vld [vmem:[#allocation9] sm:$0xf]
          %v1005 = vld [vmem:[#allocation9 + $0x4] sm:$0xf]
          %v1006 = vld [vmem:[#allocation9 + $0x8] sm:$0xf]
          %v1007 = vld [vmem:[#allocation9 + $0xc] sm:$0xf]
          %v1008 = vld [vmem:[#allocation9 + $0x10] sm:$0xf]
          %v1009 = vld [vmem:[#allocation9 + $0x14] sm:$0xf]
          %v1010 = vld [vmem:[#allocation9 + $0x18] sm:$0xf]
          %v1011 = vld [vmem:[#allocation9 + $0x1c] sm:$0xf]
          %v1012 = vld [vmem:[#allocation9 + $0x20] sm:$0xf]
          %v1013 = vld [vmem:[#allocation9 + $0x24] sm:$0xf]
          %v1014 = vld [vmem:[#allocation9 + $0x28] sm:$0xf]
          %v1015 = vld [vmem:[#allocation9 + $0x2c] sm:$0xf]
          %v1016 = vld [vmem:[#allocation9 + $0x30] sm:$0xf]
          %v1017 = vld [vmem:[#allocation9 + $0x34] sm:$0xf]
          %v1018 = vld [vmem:[#allocation9 + $0x38] sm:$0xf]
          %v1019 = vld [vmem:[#allocation9 + $0x3c] sm:$0xf]
          %v1020 = vld [vmem:[%s8] sm:$0x1]
          %v1022 = vlaneseq
          %v1023 = vshrl.u32 %v1022, 7
          %v1024 = vsub.s32 0, %v1023
          %v1025 = vrot.slane %v1020, %v1024
          %v1043 = vunpack.c.l.b16 %v1004
          %v1044 = vunpack.c.l.b16 %v1005
          %v1045 = vunpack.c.l.b16 %v1006
          %v1046 = vunpack.c.l.b16 %v1007
          %v1047 = vunpack.c.l.b16 %v1008
          %v1048 = vunpack.c.l.b16 %v1009
          %v1049 = vunpack.c.l.b16 %v1010
          %v1050 = vunpack.c.l.b16 %v1011
          %v1051 = vunpack.c.l.b16 %v1012
          %v1052 = vunpack.c.l.b16 %v1013
          %v1053 = vunpack.c.l.b16 %v1014
          %v1054 = vunpack.c.l.b16 %v1015
          %v1055 = vunpack.c.l.b16 %v1016
          %v1056 = vunpack.c.l.b16 %v1017
          %v1057 = vunpack.c.l.b16 %v1018
          %v1058 = vunpack.c.l.b16 %v1019
          %v1059 = vpack.c.b16 %v1044, %v1043
          %v1060 = vpack.c.b16 %v1046, %v1045
          %v1061 = vpack.c.b16 %v1048, %v1047
          %v1062 = vpack.c.b16 %v1050, %v1049
          %v1063 = vpack.c.b16 %v1052, %v1051
          %v1064 = vpack.c.b16 %v1054, %v1053
          %v1065 = vpack.c.b16 %v1056, %v1055
          %v1066 = vpack.c.b16 %v1058, %v1057
          %1075 = vmatprep.subr.bf16.mxu0 0
          %1076 = vmatpush1.bf16.msra.mxu0 %v1059
          %1077 = vmatprep.subr.bf16.mxu0 0
          %1078 = vmatpush1.bf16.msra.mxu0 %v1060
          %1079 = vmatprep.subr.bf16.mxu0 0
          %1080 = vmatpush1.bf16.msra.mxu0 %v1061
          %1081 = vmatprep.subr.bf16.mxu0 0
          %1082 = vmatpush1.bf16.msra.mxu0 %v1062
          %1083 = vmatprep.subr.bf16.mxu0 0
          %1084 = vmatpush1.bf16.msra.mxu0 %v1063
          %1085 = vmatprep.subr.bf16.mxu0 0
          %1086 = vmatpush1.bf16.msra.mxu0 %v1064
          %1087 = vmatprep.subr.bf16.mxu0 0
          %1088 = vmatpush1.bf16.msra.mxu0 %v1065
          %1089 = vmatprep.subr.bf16.mxu0 0
          %1090 = vmatpush1.bf16.msra.mxu0 %v1066
          %1091 = vmatprep.subr.bf16.mxu0 0
          %1092 = vmatpush1.bf16.msra.mxu0 0
          %1093 = vmatprep.subr.bf16.mxu0 0
          %1094 = vmatpush1.bf16.msra.mxu0 0
          %1095 = vmatprep.subr.bf16.mxu0 0
          %1096 = vmatpush1.bf16.msra.mxu0 0
          %1097 = vmatprep.subr.bf16.mxu0 0
          %1098 = vmatpush1.bf16.msra.mxu0 0
          %1099 = vmatprep.subr.bf16.mxu0 0
          %1100 = vmatpush1.bf16.msra.mxu0 0
          %1101 = vmatprep.subr.bf16.mxu0 0
          %1102 = vmatpush1.bf16.msra.mxu0 0
          %1103 = vmatprep.subr.bf16.mxu0 0
          %1104 = vmatpush1.bf16.msra.mxu0 0
          %1105 = vmatprep.subr.bf16.mxu0 0
          %1106 = vmatpush1.bf16.msra.mxu0 0
          %1107 = vmatprep.mubr.bf16.mxu0 0
          %1108 = vmatmul.mubr.bf16.gmra.mrb[0].mxu0 %v1003
          %v1109 = vpop.f32.mrb[0].mxu0
          %v1110 = vadd.f32 %v1025, %v1109
          %v1111 = vpop.f32.mrb[0].mxu0
          %v1112 = vpop.f32.mrb[0].mxu0
          %v1113 = vadd.f32 %v1025, %v1112
          %v1114 = vpop.f32.mrb[0].mxu0
          %1115 = vdwg.mxu0
          %1116 = vst [vmem:[#allocation11] sm:$0xff] %v1110
          %1117 = vst [vmem:[#allocation11 + $0x8] sm:$0xff] %v1113
        $region80: #{tpu_custom_call.1} parent=55 // pred_fallthru
          _
        // Predicated region
        $region81: #{tpu_custom_call.1} parent=55 // pred_check
          %p1118 = pneg %p233
        $region82: #{tpu_custom_call.1} parent=55 // pred_check_branch
          %1120 = sbr.rel (%p1118) target = $region84
        $region83: #{tpu_custom_call.1} parent=55 // pred_region
          %s1122 = ssub.s32 256, 256
          %1123 = vsyncadd [#allocation5], %s1122
          %s1124 = sshll.u32 [#allocation11], 4
          %s1125 = int_to_ptr.vmem [resolvable:$true] %s1124
          %1130 = dma.vmem_to_hbm [thread:$0]  %s1125, 256, %s9, [#allocation5], 128, 128, 8
        $region84: #{tpu_custom_call.1} parent=55 // pred_fallthru
          _
        // Predicated region
        $region85: #{tpu_custom_call.1} parent=55 // pred_check
          %p1131 = pneg %p233
        $region86: #{tpu_custom_call.1} parent=55 // pred_check_branch
          %1133 = sbr.rel (%p1131) target = $region88
        $region87: #{tpu_custom_call.1} parent=55 // pred_region
          %1134 = dma.done [#allocation5], 256
        $region88: #{tpu_custom_call.1} parent=55 // pred_fallthru
          _
      $region56: #{tpu_custom_call.1} parent=5 // pred_fallthru
        _
      %p1135 = scmp.le.s32.totalorder 2, %s21
      // Predicated region
      $region89: #{tpu_custom_call.1} parent=5 // pred_check
        %p1136 = pneg %p1135
      $region90: #{tpu_custom_call.1} parent=5 // pred_check_branch
        %1138 = sbr.rel (%p1136) target = $region92
      $region91: #{tpu_custom_call.1} parent=5 // pred_region
        %s1139 = ssub.s32 %s21, 2
      $region92: #{tpu_custom_call.1} parent=5 // pred_fallthru
        _
    $region6: #{tpu_custom_call.1} parent=1 // loop_footer
      %s25 = sadd.s32 1, %s21
    $region7: #{tpu_custom_call.1} parent=1 // loop_footer_branch
      %20 = sbr.rel target = $region3
    $region8: #{tpu_custom_call.1} parent=1 // loop_exit
      _
    %1140 = vsyncpa [#allocation4], 1
    %s1141 = scalar_lea.sflag [#allocation4], 1
    %1142 = vsyncpa %s1141, 1
    %1143 = vsyncpa [#allocation7], 1
    %s1144 = scalar_lea.sflag [#allocation7], 1
    %1145 = vsyncpa %s1144, 1
    %1146 = vsyncpa [#allocation10], 1
    %1147 = vsyncpa [#allocation5], 1
    %s1148 = scalar_lea.sflag [#allocation5], 1
    %1149 = vsyncpa %s1148, 1

</llo_original>
